<compile_context>
chip_gen: v7x
topology: tpu7x:2x2x1
jax: 0.10.0
libtpu: 0.0.40
codegen_flags: <defaults>
</compile_context>

<pallas_src>
import math
from functools import partial

import jax
import jax.numpy as jnp
from jax.experimental import pallas as pl
from jax.experimental.pallas import tpu as pltpu


# ----------------------------- tiling helpers ------------------------------ #

def _pick_tile(dim, candidates):
    """Largest candidate that evenly divides `dim`, else the full dim."""
    for c in candidates:
        if dim % c == 0:
            return c
    return dim


def _round_up(v, m):
    return (v + m - 1) // m * m


# ------------------------- fused matmul Pallas kernels ---------------------- #
# Each kernel produces one (tm, tn) output tile.  The K grid axis (axis 2) is a
# sequential reduction: the f32 accumulator lives in VMEM scratch, is zeroed at
# k == 0 and written out (with the fused epilogue) at the last k step.

def _accumulate(a_ref, b_ref, acc_ref):
    @pl.when(pl.program_id(2) == 0)
    def _():
        acc_ref[...] = jnp.zeros_like(acc_ref)

    acc_ref[...] += jnp.dot(a_ref[...], b_ref[...],
                            preferred_element_type=jnp.float32)


def _mm_bias_kernel(a_ref, b_ref, bias_ref, o_ref, acc_ref):
    _accumulate(a_ref, b_ref, acc_ref)

    @pl.when(pl.program_id(2) == pl.num_programs(2) - 1)
    def _():
        o_ref[...] = (acc_ref[...] + bias_ref[...]).astype(o_ref.dtype)


def _mm_bias_relu_kernel(a_ref, b_ref, bias_ref, o_ref, acc_ref):
    _accumulate(a_ref, b_ref, acc_ref)

    @pl.when(pl.program_id(2) == pl.num_programs(2) - 1)
    def _():
        o_ref[...] = jnp.maximum(acc_ref[...] + bias_ref[...],
                                 0.0).astype(o_ref.dtype)


def _mm_bias_res_relu_kernel(a_ref, b_ref, bias_ref, r_ref, o_ref, acc_ref):
    _accumulate(a_ref, b_ref, acc_ref)

    @pl.when(pl.program_id(2) == pl.num_programs(2) - 1)
    def _():
        y = acc_ref[...] + bias_ref[...] + r_ref[...].astype(jnp.float32)
        o_ref[...] = jnp.maximum(y, 0.0).astype(o_ref.dtype)


def _matmul_fused(a, w, bias, residual, relu, out_dtype):
    """(M,K)@(K,Cout) + bias (+ residual) (+ ReLU), tiled over (M, Cout, K)."""
    M, K = a.shape
    Cout = w.shape[1]

    tm = _pick_tile(M, (256, 128, 64, 32, 16, 8))
    tn = _pick_tile(Cout, (256, 128))
    tk = _pick_tile(K, (512, 384, 256, 128))
    grid = (M // tm, Cout // tn, K // tk)

    in_specs = [pl.BlockSpec((tm, tk), lambda i, j, k: (i, k)),
                pl.BlockSpec((tk, tn), lambda i, j, k: (k, j)),
                pl.BlockSpec((1, tn), lambda i, j, k: (0, j))]
    inputs = [a, w, bias.reshape(1, Cout).astype(jnp.float32)]

    if residual is not None:
        in_specs.append(pl.BlockSpec((tm, tn), lambda i, j, k: (i, j)))
        inputs.append(residual.reshape(M, Cout).astype(jnp.bfloat16))
        kernel = _mm_bias_res_relu_kernel   # residual add is always followed by ReLU
    else:
        kernel = _mm_bias_relu_kernel if relu else _mm_bias_kernel

    return pl.pallas_call(
        kernel,
        out_shape=jax.ShapeDtypeStruct((M, Cout), out_dtype),
        grid_spec=pltpu.PrefetchScalarGridSpec(
            num_scalar_prefetch=0,
            grid=grid,
            in_specs=in_specs,
            out_specs=pl.BlockSpec((tm, tn), lambda i, j, k: (i, j)),
            scratch_shapes=[pltpu.VMEM((tm, tn), jnp.float32)]),
        compiler_params=pltpu.CompilerParams(
            dimension_semantics=("parallel", "parallel", "arbitrary")),
    )(*inputs)


# --------------------------- fused conv + BN (+res) ------------------------- #

@partial(jax.jit, static_argnames=("kh", "kw", "stride", "pad", "relu"))
def conv_bn(x, w, bias, residual, *, kh, kw, stride, pad, relu):
    """Fused conv + folded-BN bias (+ residual) (+ ReLU).

    x: NHWC activations.  w: [kh*kw*Cin (maybe zero-padded), Cout] bf16 weights
    with the BN scale already folded in.  bias: [Cout] f32 folded BN bias.
    """
    N, H, W, C = x.shape
    Ho = (H + 2 * pad - kh) // stride + 1
    Wo = (W + 2 * pad - kw) // stride + 1

    x = x.astype(jnp.bfloat16)
    if pad > 0:
        x = jnp.pad(x, ((0, 0), (pad, pad), (pad, pad), (0, 0)))

    # im2col in bf16 (glue; the matmul itself runs in the Pallas kernel).
    # TODO(synk): gather the kh*kw taps from a VMEM-resident padded tile inside
    # the kernel instead of materialising the im2col matrix in HBM.
    if kh == 1 and kw == 1:
        a = x[:, ::stride, ::stride, :].reshape(N * Ho * Wo, C)
    else:
        patches = [x[:, i:i + Ho * stride:stride, j:j + Wo * stride:stride, :]
                   for i in range(kh) for j in range(kw)]
        a = jnp.concatenate(patches, axis=-1).reshape(N * Ho * Wo, kh * kw * C)

    # weights may carry zero-padded K rows (stem: 147 -> 160); pad A to match.
    if a.shape[1] < w.shape[0]:
        a = jnp.pad(a, ((0, 0), (0, w.shape[0] - a.shape[1])))

    out = _matmul_fused(a, w, bias, residual, relu, jnp.bfloat16)
    return out.reshape(N, Ho, Wo, w.shape[1])


# ------------------------------- max pooling -------------------------------- #

def _maxpool9_kernel(ee_ref, eo_ref, oe_ref, oo_ref, o_ref):
    Ho, Wo = o_ref.shape[1], o_ref.shape[2]
    m = ee_ref[0, 0:Ho, 0:Wo, :]                          # tap (2i,   2j)
    m = jnp.maximum(m, eo_ref[0, 0:Ho, 0:Wo, :])          # tap (2i,   2j+1)
    m = jnp.maximum(m, ee_ref[0, 0:Ho, 1:Wo + 1, :])      # tap (2i,   2j+2)
    m = jnp.maximum(m, oe_ref[0, 0:Ho, 0:Wo, :])          # tap (2i+1, 2j)
    m = jnp.maximum(m, oo_ref[0, 0:Ho, 0:Wo, :])          # tap (2i+1, 2j+1)
    m = jnp.maximum(m, oe_ref[0, 0:Ho, 1:Wo + 1, :])      # tap (2i+1, 2j+2)
    m = jnp.maximum(m, ee_ref[0, 1:Ho + 1, 0:Wo, :])      # tap (2i+2, 2j)
    m = jnp.maximum(m, eo_ref[0, 1:Ho + 1, 0:Wo, :])      # tap (2i+2, 2j+1)
    m = jnp.maximum(m, ee_ref[0, 1:Ho + 1, 1:Wo + 1, :])  # tap (2i+2, 2j+2)
    o_ref[0] = m


@jax.jit
def maxpool_3x3_s2(x):
    """3x3 max-pool, stride 2, pad 1 (ResNet stem).  x: NHWC."""
    N, H, W, C = x.shape
    assert H % 2 == 0 and W % 2 == 0
    Ho = (H + 2 - 3) // 2 + 1
    Wo = (W + 2 - 3) // 2 + 1
    xp = jnp.pad(x, ((0, 0), (1, 1), (1, 1), (0, 0)), constant_values=-jnp.inf)
    # Even/odd decimation (done once in XLA) so the kernel only needs
    # contiguous shifted views -> ~1x input + 1x output HBM traffic instead of
    # a stacked [9, M, C] copy in HBM.
    views = [xp[:, 0::2, 0::2, :], xp[:, 0::2, 1::2, :],
             xp[:, 1::2, 0::2, :], xp[:, 1::2, 1::2, :]]  # each (N, Ho+1, Wo+1, C)
    in_spec = pl.BlockSpec((1, Ho + 1, Wo + 1, C), lambda n: (n, 0, 0, 0))
    return pl.pallas_call(
        _maxpool9_kernel,
        out_shape=jax.ShapeDtypeStruct((N, Ho, Wo, C), x.dtype),
        grid=(N,),
        in_specs=[in_spec] * 4,
        out_specs=pl.BlockSpec((1, Ho, Wo, C), lambda n: (n, 0, 0, 0)),
        compiler_params=pltpu.CompilerParams(dimension_semantics=("parallel",)),
    )(*views)


# --------------------------------- FC head ---------------------------------- #

@jax.jit
def fc_head(x, w, b):
    """Adaptive avg-pool to (1,1) + Linear(2048 -> out_features)."""
    feat = jnp.mean(x.astype(jnp.float32), axis=(1, 2)).astype(jnp.bfloat16)
    return _matmul_fused(feat, w, b, None, False, jnp.float32)


# ----------------------------- parameter creation --------------------------- #

_LAYER_CFG = [(64, 3, 1), (128, 4, 2), (256, 23, 2), (512, 3, 2)]  # ResNet-101


def _conv_bn_folded(key, kh, kw, cin, cout, eps=1e-5):
    """Synthetic conv weight in im2col layout with the BN scale folded in.

    Returns (w_bf16[K_pad, cout], bias_f32[cout]).  K is zero-padded to a
    multiple of 16 so bf16 tiles stay sublane-aligned (only the 7x7x3 stem,
    K = 147 -> 160, is affected); conv_bn zero-pads matching A columns.
    """
    kw_key, k1, k2, k3 = jax.random.split(key, 4)
    fan_in = kh * kw * cin
    # 0.5x He init keeps activations well-bounded through 33 residual blocks
    w = (jax.random.normal(kw_key, (fan_in, cout), jnp.float32)
         * (0.5 * math.sqrt(2.0 / fan_in)))
    gamma = 1.0 + 0.1 * jax.random.normal(k1, (cout,), jnp.float32)
    beta = 0.1 * jax.random.normal(k2, (cout,), jnp.float32)
    mean = 0.1 * jax.random.normal(k3, (cout,), jnp.float32)
    var = jnp.ones((cout,), jnp.float32)
    scale = gamma / jnp.sqrt(var + eps)
    bias = beta - mean * scale
    w = w * scale[None, :]                 # fold BN scale into the weight cols
    k_pad = _round_up(fan_in, 16)
    if k_pad != fan_in:
        w = jnp.pad(w, ((0, k_pad - fan_in), (0, 0)))
    return w.astype(jnp.bfloat16), bias.astype(jnp.float32)


def make_resnet101_params(key, out_features):
    counter = [0]

    def nk():
        counter[0] += 1
        return jax.random.fold_in(key, counter[0])

    params = {"conv1": _conv_bn_folded(nk(), 7, 7, 3, 64), "layers": []}
    inplanes = 64
    for planes, blocks, stride in _LAYER_CFG:
        blk_list = []
        for b in range(blocks):
            blk = {
                "conv1": _conv_bn_folded(nk(), 1, 1, inplanes, planes),
                "conv2": _conv_bn_folded(nk(), 3, 3, planes, planes),
                "conv3": _conv_bn_folded(nk(), 1, 1, planes, planes * 4),
            }
            if b == 0:  # torchvision: downsample on the first block of each stage
                blk["downsample"] = _conv_bn_folded(nk(), 1, 1, inplanes, planes * 4)
            blk_list.append(blk)
            inplanes = planes * 4
        params["layers"].append(blk_list)

    params["fc_w"] = (jax.random.normal(nk(), (2048, out_features), jnp.float32)
                      * math.sqrt(1.0 / 2048)).astype(jnp.bfloat16)
    params["fc_b"] = 0.01 * jax.random.normal(nk(), (out_features,), jnp.float32)
    return params


# --------------------------------- forward ---------------------------------- #

def resnet101_forward(params, x_nchw):
    # layout: input NCHW (PyTorch convention) -> NHWC bf16 for the TPU kernels
    x = jnp.transpose(x_nchw, (0, 2, 3, 1)).astype(jnp.bfloat16)

    # stem: conv 7x7/2 + BN + ReLU, maxpool 3x3/2
    w, b = params["conv1"]
    x = conv_bn(x, w, b, None, kh=7, kw=7, stride=2, pad=3, relu=True)
    x = maxpool_3x3_s2(x)

    # four bottleneck stages: [3, 4, 23, 3]
    # TODO(synk): fuse the three convs of each bottleneck into one pallas_call
    # keeping intermediates in VMEM (needs in-kernel 3x3 tap gather).
    for li, (planes, blocks, stride) in enumerate(_LAYER_CFG):
        for bi in range(blocks):
            blk = params["layers"][li][bi]
            s = stride if bi == 0 else 1
            identity = x
            w1, b1 = blk["conv1"]
            out = conv_bn(x, w1, b1, None, kh=1, kw=1, stride=1, pad=0, relu=True)
            w2, b2 = blk["conv2"]
            out = conv_bn(out, w2, b2, None, kh=3, kw=3, stride=s, pad=1, relu=True)
            if bi == 0:
                wd, bd = blk["downsample"]
                identity = conv_bn(x, wd, bd, None,
                                   kh=1, kw=1, stride=s, pad=0, relu=False)
            # conv3 + BN bias + residual add + ReLU fused in one Pallas kernel
            w3, b3 = blk["conv3"]
            x = conv_bn(out, w3, b3, identity,
                        kh=1, kw=1, stride=1, pad=0, relu=True)

    return fc_head(x, params["fc_w"], params["fc_b"])


# ----------------------------------- main ------------------------------------ #

if __name__ == "__main__":
    out_features = 10
    key = jax.random.PRNGKey(0)
    pkey, xkey = jax.random.split(key)

    params = make_resnet101_params(pkey, out_features)
    # PyTorch-style NCHW input; 32x32 is the smallest size that survives all
    # 5 downsamplings of ResNet-101 (ends at 1x1 spatial before avg-pool).
    x = jax.random.normal(xkey, (2, 3, 32, 32), jnp.float32)

    logits = resnet101_forward(params, x)
    logits = jax.block_until_ready(logits)

    assert logits.shape == (2, out_features), logits.shape
    assert bool(jnp.all(jnp.isfinite(logits)))
    print("KERNEL_OK")
</pallas_src>

<mosaic_0001>
module attributes {stable_mosaic.version = 11 : i64} {
  func.func @_mm_bias_relu_kernel(%arg0: i32, %arg1: i32, %arg2: i32, %arg3: memref<256x160xbf16, #tpu.memory_space<vmem>>, %arg4: memref<160x64xbf16, #tpu.memory_space<vmem>>, %arg5: memref<1x64xf32, #tpu.memory_space<vmem>>, %arg6: memref<256x64xbf16, #tpu.memory_space<vmem>>, %arg7: memref<256x64xf32, #tpu.memory_space<vmem>>) attributes {dimension_semantics = [#tpu.dimension_semantics<parallel>, #tpu.dimension_semantics<parallel>, #tpu.dimension_semantics<arbitrary>], iteration_bounds = array<i64: 2, 1, 1>, scalar_prefetch = 0 : i64, scratch_operands = 1 : i64, tpu.core_type = #tpu.core_type<tc>, window_params = [{transform_indices = @transform_0, window_bounds = array<i64: 256, 160>}, {transform_indices = @transform_1, window_bounds = array<i64: 160, 64>}, {transform_indices = @transform_2, window_bounds = array<i64: 1, 64>}, {transform_indices = @transform_3, window_bounds = array<i64: 256, 64>}]} {
    %c0_i32 = arith.constant 0 : i32
    %0 = arith.cmpi eq, %arg2, %c0_i32 : i32
    %1 = arith.extui %0 : i1 to i32
    %c0_i32_0 = arith.constant 0 : i32
    %2 = arith.cmpi ne, %1, %c0_i32_0 : i32
    scf.if %2 {
      %cst_10 = arith.constant 0.000000e+00 : f32
      %12 = vector.broadcast %cst_10 : f32 to vector<256x64xf32>
      %c0_11 = arith.constant 0 : index
      %c0_12 = arith.constant 0 : index
      %13 = vector.load %arg7[%c0_11, %c0_12] : memref<256x64xf32, #tpu.memory_space<vmem>>, vector<256x64xf32>
      tpu.vector_store %arg7[%c0_11, %c0_12], %12 {strides = array<i32>} : memref<256x64xf32, #tpu.memory_space<vmem>>, vector<256x64xf32>,
    } else {
    }
    %c0 = arith.constant 0 : index
    %c0_1 = arith.constant 0 : index
    %3 = vector.load %arg7[%c0, %c0_1] : memref<256x64xf32, #tpu.memory_space<vmem>>, vector<256x64xf32>
    %c0_2 = arith.constant 0 : index
    %c0_3 = arith.constant 0 : index
    %4 = vector.load %arg3[%c0_2, %c0_3] : memref<256x160xbf16, #tpu.memory_space<vmem>>, vector<256x160xbf16>
    %c0_4 = arith.constant 0 : index
    %c0_5 = arith.constant 0 : index
    %5 = vector.load %arg4[%c0_4, %c0_5] : memref<160x64xbf16, #tpu.memory_space<vmem>>, vector<160x64xbf16>
    %cst = arith.constant dense<0.000000e+00> : vector<256x64xf32>
    %6 = tpu.matmul %4, %5, %cst {dimension_numbers = #tpu.dot_dimension_numbers<[1], [0], [0], [1], [0, 0, 1, 1], [], []>} : vector<256x160xbf16>, vector<160x64xbf16>, vector<256x64xf32> -> vector<256x64xf32>
    %7 = arith.addf %3, %6 : vector<256x64xf32>
    %c0_6 = arith.constant 0 : index
    %c0_7 = arith.constant 0 : index
    %8 = vector.load %arg7[%c0_6, %c0_7] : memref<256x64xf32, #tpu.memory_space<vmem>>, vector<256x64xf32>
    tpu.vector_store %arg7[%c0_6, %c0_7], %7 {strides = array<i32>} : memref<256x64xf32, #tpu.memory_space<vmem>>, vector<256x64xf32>,
    %c0_i32_8 = arith.constant 0 : i32
    %9 = arith.cmpi eq, %arg2, %c0_i32_8 : i32
    %10 = arith.extui %9 : i1 to i32
    %c0_i32_9 = arith.constant 0 : i32
    %11 = arith.cmpi ne, %10, %c0_i32_9 : i32
    scf.if %11 {
      %c0_10 = arith.constant 0 : index
      %c0_11 = arith.constant 0 : index
      %12 = vector.load %arg7[%c0_10, %c0_11] : memref<256x64xf32, #tpu.memory_space<vmem>>, vector<256x64xf32>
      %c0_12 = arith.constant 0 : index
      %c0_13 = arith.constant 0 : index
      %13 = vector.load %arg5[%c0_12, %c0_13] : memref<1x64xf32, #tpu.memory_space<vmem>>, vector<1x64xf32>
      %14 = vector.broadcast %13 : vector<1x64xf32> to vector<256x64xf32>
      %15 = arith.addf %12, %14 : vector<256x64xf32>
      %cst_14 = arith.constant 0.000000e+00 : f32
      %16 = vector.broadcast %cst_14 : f32 to vector<256x64xf32>
      %17 = arith.maximumf %15, %16 : vector<256x64xf32>
      %18 = arith.truncf %17 : vector<256x64xf32> to vector<256x64xbf16>
      %c0_15 = arith.constant 0 : index
      %c0_16 = arith.constant 0 : index
      %19 = vector.load %arg6[%c0_15, %c0_16] : memref<256x64xbf16, #tpu.memory_space<vmem>>, vector<256x64xbf16>
      tpu.vector_store %arg6[%c0_15, %c0_16], %18 {strides = array<i32>} : memref<256x64xbf16, #tpu.memory_space<vmem>>, vector<256x64xbf16>,
    } else {
    }
    return
  }
  func.func @transform_0(%arg0: i32, %arg1: i32, %arg2: i32) -> (i32, i32) {
    %c0_i32 = arith.constant 0 : i32
    return %arg0, %arg2 : i32, i32
  }
  func.func @transform_1(%arg0: i32, %arg1: i32, %arg2: i32) -> (i32, i32) {
    %c0_i32 = arith.constant 0 : i32
    return %arg2, %arg1 : i32, i32
  }
  func.func @transform_2(%arg0: i32, %arg1: i32, %arg2: i32) -> (i32, i32) {
    %c0_i32 = arith.constant 0 : i32
    %c0_i32_0 = arith.constant 0 : i32
    return %c0_i32, %arg1 : i32, i32
  }
  func.func @transform_3(%arg0: i32, %arg1: i32, %arg2: i32) -> (i32, i32) {
    %c0_i32 = arith.constant 0 : i32
    return %arg0, %arg1 : i32, i32
  }
}

</mosaic_0001>

<llo_original>
// kernel: conv_bn.1
$region0: #{conv_bn.1}
  #allocation0 [shape = 'u32[]', space=smem, size = 0x4, offset = 0x4, fixed_abs, tag = 'smem constant byte address 0x4 - core index']
  #allocation1 [shape = 'u32[144,128]{1,0:T(1,128)}', space=vmem, size = 0x12000, scoped, tag = 'internal scratch']
  #allocation2 [shape = 'f32[256,64]{1,0:T(8,128)}', space=vmem, size = 0x20000, scoped, tag = 'scratch operand']
  %s0 = inlined_call_operand.vmem [shape: bf16[512,160], index: 0, kind: input, shape index: {}]
  %s1 = inlined_call_operand.vmem [shape: bf16[160,64], index: 1, kind: input, shape index: {}]
  %s2 = inlined_call_operand.vmem [shape: f32[1,64], index: 2, kind: input, shape index: {}]
  %s3 = inlined_call_operand.hbm [shape: bf16[512,64], index: 3, kind: output, shape index: {}]
  %s4 = sld [smem:[#allocation0]]
  $region53: #{conv_bn.1} parent=0
    _
  %s6 = ssub.s32 1, %s4
  %s7 = scalar_select 0, %s6, %s4
  $region1: #{conv_bn.1} parent=0
    #allocation3 [shape = 'u8[131072]{0}', space=vmem, size = 0x20000, scoped, tag = 'output window, operand 0']
    #allocation4 [shape = 's32[2]{0}', space=sflag, size = 0x8, scoped, tag = 'scoped memory for conv_bn.1']
    %8 = vsyncpa [#allocation4], 0
    %s9 = scalar_lea.sflag [#allocation4], 1
    %10 = vsyncpa %s9, 0
    loop: start=0, step=1, limit=4
    $region2: #{conv_bn.1} parent=1 // loop_pre_header
      _
    $region3: #{conv_bn.1} parent=1 // loop_header
      %s12 = sphi 0, %s16
      %p13 = scmp.ge.s32.totalorder %s12, 4
      %s19 = sphi 0, %s38
      %s20 = sphi 0, %s34
      %s21 = sphi 0, %s30
      %s22 = sphi 0, %s19
      %s23 = sphi 0, %s20
      %s24 = sphi 0, %s21
      %s25 = sphi 0, %s22
      %s26 = sphi 0, %s23
      %s27 = sphi 0, %s24
      %s43 = sphi 0, %s45
      %s46 = sphi 0, %s43
      %s47 = sphi 0, %s46
      %s63 = sphi 0, %s47
      %s71 = sphi 0, %s73
      %s74 = sphi 0, %s71
      %s75 = sphi 0, %s74
      %s91 = sphi 0, %s75
      %s97 = sphi 0, %s99
      %s100 = sphi 0, %s97
      %s101 = sphi 0, %s100
      %s117 = sphi 0, %s101
      %s125 = sphi 0, %s127
      %s128 = sphi 0, %s125
      %s129 = sphi 0, %s128
      %s145 = sphi 0, %s129
    $region4: #{conv_bn.1} parent=1 // loop_header_branch
      %15 = sbr.rel (%p13) target = $region8
    $region5: #{conv_bn.1} parent=1 // loop_body
      %s17 = ssub.s32 %s12, 1
      %s18 = ssub.s32 %s12, 2
      %s28 = sadd.s32 1, %s21
      %p29 = scmp.ge.s32.totalorder %s28, 1
      %s30 = scalar_select %p29, 0, %s28
      %s31 = sadd.s32 1, %s20
      %s32 = scalar_select %p29, %s31, %s20
      %p33 = scmp.ge.s32.totalorder %s32, 1
      %s34 = scalar_select %p33, 0, %s32
      %s35 = sadd.s32 1, %s19
      %s36 = scalar_select %p33, %s35, %s19
      %p37 = scmp.ge.s32.totalorder %s36, 2
      %s38 = scalar_select %p37, 0, %s36
      %s39 = ssub.s32 %s19, %s38
      %s40 = ssub.s32 %s21, %s30
      %s41 = sor.u32 %s39, %s40
      %p42 = scmp.eq.s32.totalorder %s41, 0
      %s44 = sadd.s32 %s43, 1
      %s45 = scalar_select %p42, %s43, %s44
      %p48 = pneg %p42
      %p49 = scmp.eq.s32.totalorder %s12, 1
      %p50 = por %p48, %p49
      %p51 = scmp.ne.s32.totalorder %s43, %s46
      %p52 = scmp.eq.s32.totalorder %s12, 0
      %p53 = por %p51, %p52
      %p54 = scmp.ne.s32.totalorder %s43, %s46
      %p55 = scmp.eq.s32.totalorder %s17, 1
      %p56 = por %p54, %p55
      %p57 = scmp.ne.s32.totalorder %s46, %s47
      %p58 = scmp.eq.s32.totalorder %s17, 0
      %p59 = por %p57, %p58
      %p60 = scmp.ne.s32.totalorder %s46, %s47
      %p61 = scmp.eq.s32.totalorder %s18, 1
      %p62 = por %p60, %p61
      %p64 = scmp.ne.s32.totalorder %s47, %s63
      %p65 = scmp.eq.s32.totalorder %s18, 0
      %p66 = por %p64, %p65
      %s67 = ssub.s32 %s21, %s30
      %s68 = ssub.s32 %s20, %s34
      %s69 = sor.u32 %s67, %s68
      %p70 = scmp.eq.s32.totalorder %s69, 0
      %s72 = sadd.s32 %s71, 1
      %s73 = scalar_select %p70, %s71, %s72
      %p76 = pneg %p70
      %p77 = scmp.eq.s32.totalorder %s12, 1
      %p78 = por %p76, %p77
      %p79 = scmp.ne.s32.totalorder %s71, %s74
      %p80 = scmp.eq.s32.totalorder %s12, 0
      %p81 = por %p79, %p80
      %p82 = scmp.ne.s32.totalorder %s71, %s74
      %p83 = scmp.eq.s32.totalorder %s17, 1
      %p84 = por %p82, %p83
      %p85 = scmp.ne.s32.totalorder %s74, %s75
      %p86 = scmp.eq.s32.totalorder %s17, 0
      %p87 = por %p85, %p86
      %p88 = scmp.ne.s32.totalorder %s74, %s75
      %p89 = scmp.eq.s32.totalorder %s18, 1
      %p90 = por %p88, %p89
      %p92 = scmp.ne.s32.totalorder %s75, %s91
      %p93 = scmp.eq.s32.totalorder %s18, 0
      %p94 = por %p92, %p93
      %s95 = ssub.s32 %s20, %s34
      %p96 = scmp.eq.s32.totalorder %s95, 0
      %s98 = sadd.s32 %s97, 1
      %s99 = scalar_select %p96, %s97, %s98
      %p102 = pneg %p96
      %p103 = scmp.eq.s32.totalorder %s12, 1
      %p104 = por %p102, %p103
      %p105 = scmp.ne.s32.totalorder %s97, %s100
      %p106 = scmp.eq.s32.totalorder %s12, 0
      %p107 = por %p105, %p106
      %p108 = scmp.ne.s32.totalorder %s97, %s100
      %p109 = scmp.eq.s32.totalorder %s17, 1
      %p110 = por %p108, %p109
      %p111 = scmp.ne.s32.totalorder %s100, %s101
      %p112 = scmp.eq.s32.totalorder %s17, 0
      %p113 = por %p111, %p112
      %p114 = scmp.ne.s32.totalorder %s100, %s101
      %p115 = scmp.eq.s32.totalorder %s18, 1
      %p116 = por %p114, %p115
      %p118 = scmp.ne.s32.totalorder %s101, %s117
      %p119 = scmp.eq.s32.totalorder %s18, 0
      %p120 = por %p118, %p119
      %s121 = ssub.s32 %s19, %s38
      %s122 = ssub.s32 %s20, %s34
      %s123 = sor.u32 %s121, %s122
      %p124 = scmp.eq.s32.totalorder %s123, 0
      %s126 = sadd.s32 %s125, 1
      %s127 = scalar_select %p124, %s125, %s126
      %p130 = pneg %p124
      %p131 = scmp.eq.s32.totalorder %s12, 1
      %p132 = por %p130, %p131
      %p133 = scmp.ne.s32.totalorder %s125, %s128
      %p134 = scmp.eq.s32.totalorder %s12, 0
      %p135 = por %p133, %p134
      %p136 = scmp.ne.s32.totalorder %s125, %s128
      %p137 = scmp.eq.s32.totalorder %s17, 1
      %p138 = por %p136, %p137
      %p139 = scmp.ne.s32.totalorder %s128, %s129
      %p140 = scmp.eq.s32.totalorder %s17, 0
      %p141 = por %p139, %p140
      %p142 = scmp.ne.s32.totalorder %s128, %s129
      %p143 = scmp.eq.s32.totalorder %s18, 1
      %p144 = por %p142, %p143
      %p146 = scmp.ne.s32.totalorder %s129, %s145
      %p147 = scmp.eq.s32.totalorder %s18, 0
      %p148 = por %p146, %p147
      %p149 = scmp.le.s32.totalorder 1, %s12
      %p150 = scmp.lt.s32.totalorder %s12, 3
      %p151 = pnand %p149, %p150
      %p152 = pneg %p151
      // Predicated region
      $region9: #{conv_bn.1} parent=5 // pred_check
        _
      $region10: #{conv_bn.1} parent=5 // pred_check_branch
        %154 = sbr.rel (%p151) target = $region12
      $region11: #{conv_bn.1} parent=5 // pred_region
        %s155 = ssub.s32 %s12, 1
        // Predicated region
        $region13: #{conv_bn.1} parent=11 // pred_check
          %p156 = pneg %p87
        $region14: #{conv_bn.1} parent=11 // pred_check_branch
          %158 = sbr.rel (%p156) target = $region16
        $region15: #{conv_bn.1} parent=11 // pred_region
          %s159 = smul.u32 20, %s24
          %p160 = scmp.lt.s32.totalorder %s159, 19
          %s161 = scalar_select %p160, %s159, 19
          %p162 = scmp.lt.s32.totalorder %s23, 0
          %s163 = scalar_select %p162, %s23, 0
          %s164 = sadd.s32 %s163, %s161
          %s165 = smul.addr %s164, 4
          %s166 = scalar_lea.vmem %s1, %s165
          %s167 = smul.u32 20, %s24
        $region16: #{conv_bn.1} parent=11 // pred_fallthru
          _
        // Predicated region
        $region17: #{conv_bn.1} parent=11 // pred_check
          %p168 = pneg %p113
        $region18: #{conv_bn.1} parent=11 // pred_check_branch
          %170 = sbr.rel (%p168) target = $region20
        $region19: #{conv_bn.1} parent=11 // pred_region
          %p171 = scmp.lt.s32.totalorder %s23, 0
          %s172 = scalar_select %p171, %s23, 0
          %s173 = scalar_lea.vmem %s2, %s172
        $region20: #{conv_bn.1} parent=11 // pred_fallthru
          _
      $region12: #{conv_bn.1} parent=5 // pred_fallthru
        _
      %p174 = scmp.lt.s32.totalorder %s12, 2
      // Predicated region
      $region21: #{conv_bn.1} parent=5 // pred_check
        %p175 = pneg %p174
      $region22: #{conv_bn.1} parent=5 // pred_check_branch
        %177 = sbr.rel (%p175) target = $region24
      $region23: #{conv_bn.1} parent=5 // pred_region
        // Predicated region
        $region25: #{conv_bn.1} parent=23 // pred_check
          %p178 = pneg %p53
        $region26: #{conv_bn.1} parent=23 // pred_check_branch
          %180 = sbr.rel (%p178) target = $region28
        $region27: #{conv_bn.1} parent=23 // pred_region
          %s181 = smul.u32 32, %s19
          %s182 = smul.u32 2, %s21
          %p183 = scmp.lt.s32.totalorder %s181, 63
          %s184 = scalar_select %p183, %s181, 63
          %p185 = scmp.lt.s32.totalorder %s182, 1
          %s186 = scalar_select %p185, %s182, 1
          %s187 = smul.addr %s184, 2
          %s188 = sadd.s32 %s186, %s187
          %s189 = smul.addr %s188, 4
          %s190 = scalar_lea.vmem %s0, %s189
          %s191 = smul.u32 32, %s19
          %s192 = smul.u32 2, %s21
        $region28: #{conv_bn.1} parent=23 // pred_fallthru
          _
      $region24: #{conv_bn.1} parent=5 // pred_fallthru
        _
      %p193 = scmp.le.s32.totalorder 1, %s12
      %p194 = scmp.lt.s32.totalorder %s12, 3
      %p195 = pnand %p193, %p194
      %p196 = pneg %p195
      // Predicated region
      $region29: #{conv_bn.1} parent=5 // pred_check
        _
      $region30: #{conv_bn.1} parent=5 // pred_check_branch
        %198 = sbr.rel (%p195) target = $region32
      $region31: #{conv_bn.1} parent=5 // pred_region
        %s199 = ssub.s32 %s12, 1
        %s200 = smul.u32 32, %s22
        %s201 = smul.u32 2, %s24
        %p202 = scmp.lt.s32.totalorder %s200, 63
        %s203 = scalar_select %p202, %s200, 63
        %p204 = scmp.lt.s32.totalorder %s201, 1
        %s205 = scalar_select %p204, %s201, 1
        %s206 = smul.addr %s203, 2
        %s207 = sadd.s32 %s205, %s206
        %s208 = smul.addr %s207, 4
        %s209 = scalar_lea.vmem %s0, %s208
        %p210 = pneg %p59
        %p211 = pneg %p56
        %s212 = smul.u32 20, %s24
        %p213 = scmp.lt.s32.totalorder %s212, 19
        %s214 = scalar_select %p213, %s212, 19
        %p215 = scmp.lt.s32.totalorder %s23, 0
        %s216 = scalar_select %p215, %s23, 0
        %s217 = sadd.s32 %s216, %s214
        %s218 = smul.addr %s217, 4
        %s219 = scalar_lea.vmem %s1, %s218
        %p220 = pneg %p87
        %p221 = pneg %p84
        %p222 = scmp.lt.s32.totalorder %s23, 0
        %s223 = scalar_select %p222, %s23, 0
        %s224 = scalar_lea.vmem %s2, %s223
        %p225 = pneg %p113
        %p226 = pneg %p110
        %p227 = pneg %p141
        %p228 = pneg %p138
        %s229 = sand.u32 %s128, 1
        %s230 = scalar_lea.sflag [#allocation4], %s229
        %s231 = sand.u32 %s128, 1
        %s232 = smul.addr %s231, 128
        %s233 = scalar_lea.vmem [#allocation3], %s232
        %s234 = smul.u32 32, %s22
        %s235 = smul.u32 2, %s24
        %p236 = scmp.lt.s32.totalorder %s234, 63
        %s237 = scalar_select %p236, %s234, 63
        %p238 = scmp.lt.s32.totalorder %s235, 1
        %s239 = scalar_select %p238, %s235, 1
        %s240 = smul.addr %s237, 2
        %s241 = sadd.s32 %s239, %s240
        %s242 = smul.addr %s241, 4
        %s243 = scalar_lea.vmem %s0, %s242
        %s244 = smul.u32 32, %s22
        %s245 = smul.u32 2, %s24
        %s246 = smul.u32 20, %s24
        %p247 = scmp.lt.s32.totalorder %s246, 19
        %s248 = scalar_select %p247, %s246, 19
        %p249 = scmp.lt.s32.totalorder %s23, 0
        %s250 = scalar_select %p249, %s23, 0
        %s251 = sadd.s32 %s250, %s248
        %s252 = smul.addr %s251, 4
        %s253 = scalar_lea.vmem %s1, %s252
        %s254 = smul.u32 20, %s24
        %p255 = scmp.lt.s32.totalorder %s23, 0
        %s256 = scalar_select %p255, %s23, 0
        %s257 = scalar_lea.vmem %s2, %s256
        %s258 = smul.u32 32, %s22
        %p260 = scmp.eq.s32.totalorder %s24, 0
        // Predicated region
        $region33: #{conv_bn.1} parent=31 // pred_check
          %p261 = pneg %p260
        $region34: #{conv_bn.1} parent=31 // pred_check_branch
          %263 = sbr.rel (%p261) target = $region36
        $region35: #{conv_bn.1} parent=31 // pred_region
          %vm264 = vcmask 523264
          %265 = vst.msk [vmem:[#allocation2] sm:$0xff] %vm264, 0.0
          %266 = vst.msk [vmem:[#allocation2 + $0x8] sm:$0xff] %vm264, 0.0
          %267 = vst.msk [vmem:[#allocation2 + $0x10] sm:$0xff] %vm264, 0.0
          %268 = vst.msk [vmem:[#allocation2 + $0x18] sm:$0xff] %vm264, 0.0
          %269 = vst.msk [vmem:[#allocation2 + $0x20] sm:$0xff] %vm264, 0.0
          %270 = vst.msk [vmem:[#allocation2 + $0x28] sm:$0xff] %vm264, 0.0
          %271 = vst.msk [vmem:[#allocation2 + $0x30] sm:$0xff] %vm264, 0.0
          %272 = vst.msk [vmem:[#allocation2 + $0x38] sm:$0xff] %vm264, 0.0
          %273 = vst.msk [vmem:[#allocation2 + $0x40] sm:$0xff] %vm264, 0.0
          %274 = vst.msk [vmem:[#allocation2 + $0x48] sm:$0xff] %vm264, 0.0
          %275 = vst.msk [vmem:[#allocation2 + $0x50] sm:$0xff] %vm264, 0.0
          %276 = vst.msk [vmem:[#allocation2 + $0x58] sm:$0xff] %vm264, 0.0
          %277 = vst.msk [vmem:[#allocation2 + $0x60] sm:$0xff] %vm264, 0.0
          %278 = vst.msk [vmem:[#allocation2 + $0x68] sm:$0xff] %vm264, 0.0
          %279 = vst.msk [vmem:[#allocation2 + $0x70] sm:$0xff] %vm264, 0.0
          %280 = vst.msk [vmem:[#allocation2 + $0x78] sm:$0xff] %vm264, 0.0
          %281 = vst.msk [vmem:[#allocation2 + $0x80] sm:$0xff] %vm264, 0.0
          %282 = vst.msk [vmem:[#allocation2 + $0x88] sm:$0xff] %vm264, 0.0
          %283 = vst.msk [vmem:[#allocation2 + $0x90] sm:$0xff] %vm264, 0.0
          %284 = vst.msk [vmem:[#allocation2 + $0x98] sm:$0xff] %vm264, 0.0
          %285 = vst.msk [vmem:[#allocation2 + $0xa0] sm:$0xff] %vm264, 0.0
          %286 = vst.msk [vmem:[#allocation2 + $0xa8] sm:$0xff] %vm264, 0.0
          %287 = vst.msk [vmem:[#allocation2 + $0xb0] sm:$0xff] %vm264, 0.0
          %288 = vst.msk [vmem:[#allocation2 + $0xb8] sm:$0xff] %vm264, 0.0
          %289 = vst.msk [vmem:[#allocation2 + $0xc0] sm:$0xff] %vm264, 0.0
          %290 = vst.msk [vmem:[#allocation2 + $0xc8] sm:$0xff] %vm264, 0.0
          %291 = vst.msk [vmem:[#allocation2 + $0xd0] sm:$0xff] %vm264, 0.0
          %292 = vst.msk [vmem:[#allocation2 + $0xd8] sm:$0xff] %vm264, 0.0
          %293 = vst.msk [vmem:[#allocation2 + $0xe0] sm:$0xff] %vm264, 0.0
          %294 = vst.msk [vmem:[#allocation2 + $0xe8] sm:$0xff] %vm264, 0.0
          %295 = vst.msk [vmem:[#allocation2 + $0xf0] sm:$0xff] %vm264, 0.0
          %296 = vst.msk [vmem:[#allocation2 + $0xf8] sm:$0xff] %vm264, 0.0
        $region36: #{conv_bn.1} parent=31 // pred_fallthru
          _
        %v297 = vld [vmem:[#allocation2] sm:$0xff]
        %v298 = vld [vmem:[#allocation2 + $0x8] sm:$0xff]
        %v299 = vld [vmem:[#allocation2 + $0x10] sm:$0xff]
        %v300 = vld [vmem:[#allocation2 + $0x18] sm:$0xff]
        %v301 = vld [vmem:[#allocation2 + $0x20] sm:$0xff]
        %v302 = vld [vmem:[#allocation2 + $0x28] sm:$0xff]
        %v303 = vld [vmem:[#allocation2 + $0x30] sm:$0xff]
        %v304 = vld [vmem:[#allocation2 + $0x38] sm:$0xff]
        %v305 = vld [vmem:[#allocation2 + $0x40] sm:$0xff]
        %v306 = vld [vmem:[#allocation2 + $0x48] sm:$0xff]
        %v307 = vld [vmem:[#allocation2 + $0x50] sm:$0xff]
        %v308 = vld [vmem:[#allocation2 + $0x58] sm:$0xff]
        %v309 = vld [vmem:[#allocation2 + $0x60] sm:$0xff]
        %v310 = vld [vmem:[#allocation2 + $0x68] sm:$0xff]
        %v311 = vld [vmem:[#allocation2 + $0x70] sm:$0xff]
        %v312 = vld [vmem:[#allocation2 + $0x78] sm:$0xff]
        %v313 = vld [vmem:[#allocation2 + $0x80] sm:$0xff]
        %v314 = vld [vmem:[#allocation2 + $0x88] sm:$0xff]
        %v315 = vld [vmem:[#allocation2 + $0x90] sm:$0xff]
        %v316 = vld [vmem:[#allocation2 + $0x98] sm:$0xff]
        %v317 = vld [vmem:[#allocation2 + $0xa0] sm:$0xff]
        %v318 = vld [vmem:[#allocation2 + $0xa8] sm:$0xff]
        %v319 = vld [vmem:[#allocation2 + $0xb0] sm:$0xff]
        %v320 = vld [vmem:[#allocation2 + $0xb8] sm:$0xff]
        %v321 = vld [vmem:[#allocation2 + $0xc0] sm:$0xff]
        %v322 = vld [vmem:[#allocation2 + $0xc8] sm:$0xff]
        %v323 = vld [vmem:[#allocation2 + $0xd0] sm:$0xff]
        %v324 = vld [vmem:[#allocation2 + $0xd8] sm:$0xff]
        %v325 = vld [vmem:[#allocation2 + $0xe0] sm:$0xff]
        %v326 = vld [vmem:[#allocation2 + $0xe8] sm:$0xff]
        %v327 = vld [vmem:[#allocation2 + $0xf0] sm:$0xff]
        %v328 = vld [vmem:[#allocation2 + $0xf8] sm:$0xff]
        %v329 = vld [vmem:[%s243] sm:$0xff]
        %v330 = vld [vmem:[%s243 + $0x8] sm:$0xff]
        %v331 = vld [vmem:[%s243 + $0x10] sm:$0xff]
        %v332 = vld [vmem:[%s243 + $0x18] sm:$0xff]
        %v333 = vld [vmem:[%s243 + $0x20] sm:$0xff]
        %v334 = vld [vmem:[%s243 + $0x28] sm:$0xff]
        %v335 = vld [vmem:[%s243 + $0x30] sm:$0xff]
        %v336 = vld [vmem:[%s243 + $0x38] sm:$0xff]
        %v337 = vld [vmem:[%s243 + $0x40] sm:$0xff]
        %v338 = vld [vmem:[%s243 + $0x48] sm:$0xff]
        %v339 = vld [vmem:[%s243 + $0x50] sm:$0xff]
        %v340 = vld [vmem:[%s243 + $0x58] sm:$0xff]
        %v341 = vld [vmem:[%s243 + $0x60] sm:$0xff]
        %v342 = vld [vmem:[%s243 + $0x68] sm:$0xff]
        %v343 = vld [vmem:[%s243 + $0x70] sm:$0xff]
        %v344 = vld [vmem:[%s243 + $0x78] sm:$0xff]
        %v345 = vld [vmem:[%s243 + $0x80] sm:$0xff]
        %v346 = vld [vmem:[%s243 + $0x88] sm:$0xff]
        %v347 = vld [vmem:[%s243 + $0x90] sm:$0xff]
        %v348 = vld [vmem:[%s243 + $0x98] sm:$0xff]
        %v349 = vld [vmem:[%s243 + $0xa0] sm:$0xff]
        %v350 = vld [vmem:[%s243 + $0xa8] sm:$0xff]
        %v351 = vld [vmem:[%s243 + $0xb0] sm:$0xff]
        %v352 = vld [vmem:[%s243 + $0xb8] sm:$0xff]
        %v353 = vld [vmem:[%s243 + $0xc0] sm:$0xff]
        %v354 = vld [vmem:[%s243 + $0xc8] sm:$0xff]
        %v355 = vld [vmem:[%s243 + $0xd0] sm:$0xff]
        %v356 = vld [vmem:[%s243 + $0xd8] sm:$0xff]
        %v357 = vld [vmem:[%s243 + $0xe0] sm:$0xff]
        %v358 = vld [vmem:[%s243 + $0xe8] sm:$0xff]
        %v359 = vld [vmem:[%s243 + $0xf0] sm:$0xff]
        %v360 = vld [vmem:[%s243 + $0xf8] sm:$0xff]
        %v361 = vld [vmem:[%s253] sm:$0xf]
        %v362 = vld [vmem:[%s253 + $0x4] sm:$0xf]
        %v363 = vld [vmem:[%s253 + $0x8] sm:$0xf]
        %v364 = vld [vmem:[%s253 + $0xc] sm:$0xf]
        %v365 = vld [vmem:[%s253 + $0x10] sm:$0xf]
        %v366 = vld [vmem:[%s253 + $0x14] sm:$0xf]
        %v367 = vld [vmem:[%s253 + $0x18] sm:$0xf]
        %v368 = vld [vmem:[%s253 + $0x1c] sm:$0xf]
        %v369 = vld [vmem:[%s253 + $0x20] sm:$0xf]
        %v370 = vld [vmem:[%s253 + $0x24] sm:$0xf]
        %v371 = vld [vmem:[%s253 + $0x28] sm:$0xf]
        %v372 = vld [vmem:[%s253 + $0x2c] sm:$0xf]
        %v373 = vld [vmem:[%s253 + $0x30] sm:$0xf]
        %v374 = vld [vmem:[%s253 + $0x34] sm:$0xf]
        %v375 = vld [vmem:[%s253 + $0x38] sm:$0xf]
        %v376 = vld [vmem:[%s253 + $0x3c] sm:$0xf]
        %v377 = vld [vmem:[%s253 + $0x40] sm:$0xf]
        %v378 = vld [vmem:[%s253 + $0x44] sm:$0xf]
        %v379 = vld [vmem:[%s253 + $0x48] sm:$0xf]
        %v380 = vld [vmem:[%s253 + $0x4c] sm:$0xf]
        %v413 = vunpack.c.l.b16 %v329
        %v414 = vunpack.c.h.b16 %v329
        %v415 = vunpack.c.l.b16 %v330
        %v416 = vunpack.c.h.b16 %v330
        %v417 = vunpack.c.l.b16 %v331
        %v418 = vunpack.c.h.b16 %v331
        %v419 = vunpack.c.l.b16 %v332
        %v420 = vunpack.c.h.b16 %v332
        %v421 = vunpack.c.l.b16 %v333
        %v422 = vunpack.c.h.b16 %v333
        %v423 = vunpack.c.l.b16 %v334
        %v424 = vunpack.c.h.b16 %v334
        %v425 = vunpack.c.l.b16 %v335
        %v426 = vunpack.c.h.b16 %v335
        %v427 = vunpack.c.l.b16 %v336
        %v428 = vunpack.c.h.b16 %v336
        %v429 = vunpack.c.l.b16 %v337
        %v430 = vunpack.c.h.b16 %v337
        %v431 = vunpack.c.l.b16 %v338
        %v432 = vunpack.c.h.b16 %v338
        %v433 = vunpack.c.l.b16 %v339
        %v434 = vunpack.c.h.b16 %v339
        %v435 = vunpack.c.l.b16 %v340
        %v436 = vunpack.c.h.b16 %v340
        %v437 = vunpack.c.l.b16 %v341
        %v438 = vunpack.c.h.b16 %v341
        %v439 = vunpack.c.l.b16 %v342
        %v440 = vunpack.c.h.b16 %v342
        %v441 = vunpack.c.l.b16 %v343
        %v442 = vunpack.c.h.b16 %v343
        %v443 = vunpack.c.l.b16 %v344
        %v444 = vunpack.c.h.b16 %v344
        %v445 = vunpack.c.l.b16 %v345
        %v446 = vunpack.c.h.b16 %v345
        %v447 = vunpack.c.l.b16 %v346
        %v448 = vunpack.c.h.b16 %v346
        %v449 = vunpack.c.l.b16 %v347
        %v450 = vunpack.c.h.b16 %v347
        %v451 = vunpack.c.l.b16 %v348
        %v452 = vunpack.c.h.b16 %v348
        %v453 = vunpack.c.l.b16 %v349
        %v454 = vunpack.c.h.b16 %v349
        %v455 = vunpack.c.l.b16 %v350
        %v456 = vunpack.c.h.b16 %v350
        %v457 = vunpack.c.l.b16 %v351
        %v458 = vunpack.c.h.b16 %v351
        %v459 = vunpack.c.l.b16 %v352
        %v460 = vunpack.c.h.b16 %v352
        %v461 = vunpack.c.l.b16 %v353
        %v462 = vunpack.c.h.b16 %v353
        %v463 = vunpack.c.l.b16 %v354
        %v464 = vunpack.c.h.b16 %v354
        %v465 = vunpack.c.l.b16 %v355
        %v466 = vunpack.c.h.b16 %v355
        %v467 = vunpack.c.l.b16 %v356
        %v468 = vunpack.c.h.b16 %v356
        %v469 = vunpack.c.l.b16 %v357
        %v470 = vunpack.c.h.b16 %v357
        %v471 = vunpack.c.l.b16 %v358
        %v472 = vunpack.c.h.b16 %v358
        %v473 = vunpack.c.l.b16 %v359
        %v474 = vunpack.c.h.b16 %v359
        %v475 = vunpack.c.l.b16 %v360
        %v476 = vunpack.c.h.b16 %v360
        %v477 = vpack.c.b16 %v415, %v413
        %v478 = vpack.c.b16 %v416, %v414
        %v479 = vpack.c.b16 %v419, %v417
        %v480 = vpack.c.b16 %v420, %v418
        %v481 = vpack.c.b16 %v423, %v421
        %v482 = vpack.c.b16 %v424, %v422
        %v483 = vpack.c.b16 %v427, %v425
        %v484 = vpack.c.b16 %v428, %v426
        %v485 = vpack.c.b16 %v431, %v429
        %v486 = vpack.c.b16 %v432, %v430
        %v487 = vpack.c.b16 %v435, %v433
        %v488 = vpack.c.b16 %v436, %v434
        %v489 = vpack.c.b16 %v439, %v437
        %v490 = vpack.c.b16 %v440, %v438
        %v491 = vpack.c.b16 %v443, %v441
        %v492 = vpack.c.b16 %v444, %v442
        %v493 = vpack.c.b16 %v447, %v445
        %v494 = vpack.c.b16 %v448, %v446
        %v495 = vpack.c.b16 %v451, %v449
        %v496 = vpack.c.b16 %v452, %v450
        %v497 = vpack.c.b16 %v455, %v453
        %v498 = vpack.c.b16 %v456, %v454
        %v499 = vpack.c.b16 %v459, %v457
        %v500 = vpack.c.b16 %v460, %v458
        %v501 = vpack.c.b16 %v463, %v461
        %v502 = vpack.c.b16 %v464, %v462
        %v503 = vpack.c.b16 %v467, %v465
        %v504 = vpack.c.b16 %v468, %v466
        %v505 = vpack.c.b16 %v471, %v469
        %v506 = vpack.c.b16 %v472, %v470
        %v507 = vpack.c.b16 %v475, %v473
        %v508 = vpack.c.b16 %v476, %v474
        %v545 = vunpack.c.l.b16 %v361
        %v546 = vunpack.c.l.b16 %v362
        %v547 = vunpack.c.l.b16 %v363
        %v548 = vunpack.c.l.b16 %v364
        %v549 = vunpack.c.l.b16 %v365
        %v550 = vunpack.c.l.b16 %v366
        %v551 = vunpack.c.l.b16 %v367
        %v552 = vunpack.c.l.b16 %v368
        %v553 = vunpack.c.l.b16 %v369
        %v554 = vunpack.c.l.b16 %v370
        %v555 = vunpack.c.l.b16 %v371
        %v556 = vunpack.c.l.b16 %v372
        %v557 = vunpack.c.l.b16 %v373
        %v558 = vunpack.c.l.b16 %v374
        %v559 = vunpack.c.l.b16 %v375
        %v560 = vunpack.c.l.b16 %v376
        %v561 = vunpack.c.l.b16 %v377
        %v562 = vunpack.c.l.b16 %v378
        %v563 = vunpack.c.l.b16 %v379
        %v564 = vunpack.c.l.b16 %v380
        %v565 = vpack.c.b16 %v546, %v545
        %v566 = vpack.c.b16 %v548, %v547
        %v567 = vpack.c.b16 %v550, %v549
        %v568 = vpack.c.b16 %v552, %v551
        %v569 = vpack.c.b16 %v554, %v553
        %v570 = vpack.c.b16 %v556, %v555
        %v571 = vpack.c.b16 %v558, %v557
        %v572 = vpack.c.b16 %v560, %v559
        %v573 = vpack.c.b16 %v562, %v561
        %v574 = vpack.c.b16 %v564, %v563
        %vm585 = vcmask 261120
        %v587 = vsel %vm585, %v478, 0
        %v590 = vsel %vm585, %v480, 0
        %v593 = vsel %vm585, %v482, 0
        %v596 = vsel %vm585, %v484, 0
        %v599 = vsel %vm585, %v486, 0
        %v602 = vsel %vm585, %v488, 0
        %v605 = vsel %vm585, %v490, 0
        %v608 = vsel %vm585, %v492, 0
        %v611 = vsel %vm585, %v494, 0
        %v614 = vsel %vm585, %v496, 0
        %v617 = vsel %vm585, %v498, 0
        %v620 = vsel %vm585, %v500, 0
        %v623 = vsel %vm585, %v502, 0
        %v626 = vsel %vm585, %v504, 0
        %v629 = vsel %vm585, %v506, 0
        %v632 = vsel %vm585, %v508, 0
        %634 = vmatprep.subr.bf16.mxu0 0
        %635 = vmatpush1.bf16.msra.mxu0 %v565
        %636 = vmatprep.subr.bf16.mxu0 0
        %637 = vmatpush1.bf16.msra.mxu0 %v566
        %638 = vmatprep.subr.bf16.mxu0 0
        %639 = vmatpush1.bf16.msra.mxu0 %v567
        %640 = vmatprep.subr.bf16.mxu0 0
        %641 = vmatpush1.bf16.msra.mxu0 %v568
        %642 = vmatprep.subr.bf16.mxu0 0
        %643 = vmatpush1.bf16.msra.mxu0 %v569
        %644 = vmatprep.subr.bf16.mxu0 0
        %645 = vmatpush1.bf16.msra.mxu0 %v570
        %646 = vmatprep.subr.bf16.mxu0 0
        %647 = vmatpush1.bf16.msra.mxu0 %v571
        %648 = vmatprep.subr.bf16.mxu0 0
        %649 = vmatpush1.bf16.msra.mxu0 %v572
        %650 = vmatprep.subr.bf16.mxu0 0
        %651 = vmatpush1.bf16.msra.mxu0 %v573
        %652 = vmatprep.subr.bf16.mxu0 0
        %653 = vmatpush1.bf16.msra.mxu0 %v574
        %654 = vmatprep.subr.bf16.mxu0 0
        %655 = vmatpush1.bf16.msra.mxu0 0
        %656 = vmatprep.subr.bf16.mxu0 0
        %657 = vmatpush1.bf16.msra.mxu0 0
        %658 = vmatprep.subr.bf16.mxu0 0
        %659 = vmatpush1.bf16.msra.mxu0 0
        %660 = vmatprep.subr.bf16.mxu0 0
        %661 = vmatpush1.bf16.msra.mxu0 0
        %662 = vmatprep.subr.bf16.mxu0 0
        %663 = vmatpush1.bf16.msra.mxu0 0
        %664 = vmatprep.subr.bf16.mxu0 0
        %665 = vmatpush1.bf16.msra.mxu0 0
        %666 = vmatprep.mubr.bf16.mxu0 %v587
        %667 = vmatmul.mubr.bf16.gmra.mrb[0].mxu0 %v477
        %v668 = vpop.f32.mrb[0].mxu0
        %v669 = vadd.f32 0.0, %v668
        %v670 = vpop.f32.mrb[0].mxu0
        %v671 = vpop.f32.mrb[0].mxu0
        %v672 = vadd.f32 0.0, %v671
        %v673 = vpop.f32.mrb[0].mxu0
        %674 = vmatprep.mubr.bf16.mxu0 %v590
        %675 = vmatmul.mubr.bf16.gmra.mrb[0].mxu0 %v479
        %v676 = vpop.f32.mrb[0].mxu0
        %v677 = vadd.f32 0.0, %v676
        %v678 = vpop.f32.mrb[0].mxu0
        %v679 = vpop.f32.mrb[0].mxu0
        %v680 = vadd.f32 0.0, %v679
        %v681 = vpop.f32.mrb[0].mxu0
        %682 = vmatprep.mubr.bf16.mxu0 %v593
        %683 = vmatmul.mubr.bf16.gmra.mrb[0].mxu0 %v481
        %v684 = vpop.f32.mrb[0].mxu0
        %v685 = vadd.f32 0.0, %v684
        %v686 = vpop.f32.mrb[0].mxu0
        %v687 = vpop.f32.mrb[0].mxu0
        %v688 = vadd.f32 0.0, %v687
        %v689 = vpop.f32.mrb[0].mxu0
        %690 = vmatprep.mubr.bf16.mxu0 %v596
        %691 = vmatmul.mubr.bf16.gmra.mrb[0].mxu0 %v483
        %v692 = vpop.f32.mrb[0].mxu0
        %v693 = vadd.f32 0.0, %v692
        %v694 = vpop.f32.mrb[0].mxu0
        %v695 = vpop.f32.mrb[0].mxu0
        %v696 = vadd.f32 0.0, %v695
        %v697 = vpop.f32.mrb[0].mxu0
        %698 = vmatprep.mubr.bf16.mxu0 %v599
        %699 = vmatmul.mubr.bf16.gmra.mrb[0].mxu0 %v485
        %v700 = vpop.f32.mrb[0].mxu0
        %v701 = vadd.f32 0.0, %v700
        %v702 = vpop.f32.mrb[0].mxu0
        %v703 = vpop.f32.mrb[0].mxu0
        %v704 = vadd.f32 0.0, %v703
        %v705 = vpop.f32.mrb[0].mxu0
        %706 = vmatprep.mubr.bf16.mxu0 %v602
        %707 = vmatmul.mubr.bf16.gmra.mrb[0].mxu0 %v487
        %v708 = vpop.f32.mrb[0].mxu0
        %v709 = vadd.f32 0.0, %v708
        %v710 = vpop.f32.mrb[0].mxu0
        %v711 = vpop.f32.mrb[0].mxu0
        %v712 = vadd.f32 0.0, %v711
        %v713 = vpop.f32.mrb[0].mxu0
        %714 = vmatprep.mubr.bf16.mxu0 %v605
        %715 = vmatmul.mubr.bf16.gmra.mrb[0].mxu0 %v489
        %v716 = vpop.f32.mrb[0].mxu0
        %v717 = vadd.f32 0.0, %v716
        %v718 = vpop.f32.mrb[0].mxu0
        %v719 = vpop.f32.mrb[0].mxu0
        %v720 = vadd.f32 0.0, %v719
        %v721 = vpop.f32.mrb[0].mxu0
        %722 = vmatprep.mubr.bf16.mxu0 %v608
        %723 = vmatmul.mubr.bf16.gmra.mrb[0].mxu0 %v491
        %v724 = vpop.f32.mrb[0].mxu0
        %v725 = vadd.f32 0.0, %v724
        %v726 = vpop.f32.mrb[0].mxu0
        %v727 = vpop.f32.mrb[0].mxu0
        %v728 = vadd.f32 0.0, %v727
        %v729 = vpop.f32.mrb[0].mxu0
        %730 = vmatprep.mubr.bf16.mxu0 %v611
        %731 = vmatmul.mubr.bf16.gmra.mrb[0].mxu0 %v493
        %v732 = vpop.f32.mrb[0].mxu0
        %v733 = vadd.f32 0.0, %v732
        %v734 = vpop.f32.mrb[0].mxu0
        %v735 = vpop.f32.mrb[0].mxu0
        %v736 = vadd.f32 0.0, %v735
        %v737 = vpop.f32.mrb[0].mxu0
        %738 = vmatprep.mubr.bf16.mxu0 %v614
        %739 = vmatmul.mubr.bf16.gmra.mrb[0].mxu0 %v495
        %v740 = vpop.f32.mrb[0].mxu0
        %v741 = vadd.f32 0.0, %v740
        %v742 = vpop.f32.mrb[0].mxu0
        %v743 = vpop.f32.mrb[0].mxu0
        %v744 = vadd.f32 0.0, %v743
        %v745 = vpop.f32.mrb[0].mxu0
        %746 = vmatprep.mubr.bf16.mxu0 %v617
        %747 = vmatmul.mubr.bf16.gmra.mrb[0].mxu0 %v497
        %v748 = vpop.f32.mrb[0].mxu0
        %v749 = vadd.f32 0.0, %v748
        %v750 = vpop.f32.mrb[0].mxu0
        %v751 = vpop.f32.mrb[0].mxu0
        %v752 = vadd.f32 0.0, %v751
        %v753 = vpop.f32.mrb[0].mxu0
        %754 = vmatprep.mubr.bf16.mxu0 %v620
        %755 = vmatmul.mubr.bf16.gmra.mrb[0].mxu0 %v499
        %v756 = vpop.f32.mrb[0].mxu0
        %v757 = vadd.f32 0.0, %v756
        %v758 = vpop.f32.mrb[0].mxu0
        %v759 = vpop.f32.mrb[0].mxu0
        %v760 = vadd.f32 0.0, %v759
        %v761 = vpop.f32.mrb[0].mxu0
        %762 = vmatprep.mubr.bf16.mxu0 %v623
        %763 = vmatmul.mubr.bf16.gmra.mrb[0].mxu0 %v501
        %v764 = vpop.f32.mrb[0].mxu0
        %v765 = vadd.f32 0.0, %v764
        %v766 = vpop.f32.mrb[0].mxu0
        %v767 = vpop.f32.mrb[0].mxu0
        %v768 = vadd.f32 0.0, %v767
        %v769 = vpop.f32.mrb[0].mxu0
        %770 = vmatprep.mubr.bf16.mxu0 %v626
        %771 = vmatmul.mubr.bf16.gmra.mrb[0].mxu0 %v503
        %v772 = vpop.f32.mrb[0].mxu0
        %v773 = vadd.f32 0.0, %v772
        %v774 = vpop.f32.mrb[0].mxu0
        %v775 = vpop.f32.mrb[0].mxu0
        %v776 = vadd.f32 0.0, %v775
        %v777 = vpop.f32.mrb[0].mxu0
        %778 = vmatprep.mubr.bf16.mxu0 %v629
        %779 = vmatmul.mubr.bf16.gmra.mrb[0].mxu0 %v505
        %v780 = vpop.f32.mrb[0].mxu0
        %v781 = vadd.f32 0.0, %v780
        %v782 = vpop.f32.mrb[0].mxu0
        %v783 = vpop.f32.mrb[0].mxu0
        %v784 = vadd.f32 0.0, %v783
        %v785 = vpop.f32.mrb[0].mxu0
        %786 = vmatprep.mubr.bf16.mxu0 %v632
        %787 = vmatmul.mubr.bf16.gmra.mrb[0].mxu0 %v507
        %v788 = vpop.f32.mrb[0].mxu0
        %v789 = vadd.f32 0.0, %v788
        %v790 = vpop.f32.mrb[0].mxu0
        %v791 = vpop.f32.mrb[0].mxu0
        %v792 = vadd.f32 0.0, %v791
        %v793 = vpop.f32.mrb[0].mxu0
        %794 = vdwg.mxu0
        %v795 = vadd.f32 %v297, %v669
        %v796 = vadd.f32 %v298, %v672
        %v797 = vadd.f32 %v299, %v677
        %v798 = vadd.f32 %v300, %v680
        %v799 = vadd.f32 %v301, %v685
        %v800 = vadd.f32 %v302, %v688
        %v801 = vadd.f32 %v303, %v693
        %v802 = vadd.f32 %v304, %v696
        %v803 = vadd.f32 %v305, %v701
        %v804 = vadd.f32 %v306, %v704
        %v805 = vadd.f32 %v307, %v709
        %v806 = vadd.f32 %v308, %v712
        %v807 = vadd.f32 %v309, %v717
        %v808 = vadd.f32 %v310, %v720
        %v809 = vadd.f32 %v311, %v725
        %v810 = vadd.f32 %v312, %v728
        %v811 = vadd.f32 %v313, %v733
        %v812 = vadd.f32 %v314, %v736
        %v813 = vadd.f32 %v315, %v741
        %v814 = vadd.f32 %v316, %v744
        %v815 = vadd.f32 %v317, %v749
        %v816 = vadd.f32 %v318, %v752
        %v817 = vadd.f32 %v319, %v757
        %v818 = vadd.f32 %v320, %v760
        %v819 = vadd.f32 %v321, %v765
        %v820 = vadd.f32 %v322, %v768
        %v821 = vadd.f32 %v323, %v773
        %v822 = vadd.f32 %v324, %v776
        %v823 = vadd.f32 %v325, %v781
        %v824 = vadd.f32 %v326, %v784
        %v825 = vadd.f32 %v327, %v789
        %v826 = vadd.f32 %v328, %v792
        %vm827 = vcmask 523264
        %828 = vst.msk [vmem:[#allocation2] sm:$0xff] %vm827, %v795
        %829 = vst.msk [vmem:[#allocation2 + $0x8] sm:$0xff] %vm827, %v796
        %830 = vst.msk [vmem:[#allocation2 + $0x10] sm:$0xff] %vm827, %v797
        %831 = vst.msk [vmem:[#allocation2 + $0x18] sm:$0xff] %vm827, %v798
        %832 = vst.msk [vmem:[#allocation2 + $0x20] sm:$0xff] %vm827, %v799
        %833 = vst.msk [vmem:[#allocation2 + $0x28] sm:$0xff] %vm827, %v800
        %834 = vst.msk [vmem:[#allocation2 + $0x30] sm:$0xff] %vm827, %v801
        %835 = vst.msk [vmem:[#allocation2 + $0x38] sm:$0xff] %vm827, %v802
        %836 = vst.msk [vmem:[#allocation2 + $0x40] sm:$0xff] %vm827, %v803
        %837 = vst.msk [vmem:[#allocation2 + $0x48] sm:$0xff] %vm827, %v804
        %838 = vst.msk [vmem:[#allocation2 + $0x50] sm:$0xff] %vm827, %v805
        %839 = vst.msk [vmem:[#allocation2 + $0x58] sm:$0xff] %vm827, %v806
        %840 = vst.msk [vmem:[#allocation2 + $0x60] sm:$0xff] %vm827, %v807
        %841 = vst.msk [vmem:[#allocation2 + $0x68] sm:$0xff] %vm827, %v808
        %842 = vst.msk [vmem:[#allocation2 + $0x70] sm:$0xff] %vm827, %v809
        %843 = vst.msk [vmem:[#allocation2 + $0x78] sm:$0xff] %vm827, %v810
        %844 = vst.msk [vmem:[#allocation2 + $0x80] sm:$0xff] %vm827, %v811
        %845 = vst.msk [vmem:[#allocation2 + $0x88] sm:$0xff] %vm827, %v812
        %846 = vst.msk [vmem:[#allocation2 + $0x90] sm:$0xff] %vm827, %v813
        %847 = vst.msk [vmem:[#allocation2 + $0x98] sm:$0xff] %vm827, %v814
        %848 = vst.msk [vmem:[#allocation2 + $0xa0] sm:$0xff] %vm827, %v815
        %849 = vst.msk [vmem:[#allocation2 + $0xa8] sm:$0xff] %vm827, %v816
        %850 = vst.msk [vmem:[#allocation2 + $0xb0] sm:$0xff] %vm827, %v817
        %851 = vst.msk [vmem:[#allocation2 + $0xb8] sm:$0xff] %vm827, %v818
        %852 = vst.msk [vmem:[#allocation2 + $0xc0] sm:$0xff] %vm827, %v819
        %853 = vst.msk [vmem:[#allocation2 + $0xc8] sm:$0xff] %vm827, %v820
        %854 = vst.msk [vmem:[#allocation2 + $0xd0] sm:$0xff] %vm827, %v821
        %855 = vst.msk [vmem:[#allocation2 + $0xd8] sm:$0xff] %vm827, %v822
        %856 = vst.msk [vmem:[#allocation2 + $0xe0] sm:$0xff] %vm827, %v823
        %857 = vst.msk [vmem:[#allocation2 + $0xe8] sm:$0xff] %vm827, %v824
        %858 = vst.msk [vmem:[#allocation2 + $0xf0] sm:$0xff] %vm827, %v825
        %859 = vst.msk [vmem:[#allocation2 + $0xf8] sm:$0xff] %vm827, %v826
        // Predicated region
        $region37: #{conv_bn.1} parent=31 // pred_check
          %p860 = pneg %p260
        $region38: #{conv_bn.1} parent=31 // pred_check_branch
          %862 = sbr.rel (%p860) target = $region40
        $region39: #{conv_bn.1} parent=31 // pred_region
          %v863 = vld [vmem:[#allocation2] sm:$0xff]
          %v864 = vld [vmem:[#allocation2 + $0x8] sm:$0xff]
          %v865 = vld [vmem:[#allocation2 + $0x10] sm:$0xff]
          %v866 = vld [vmem:[#allocation2 + $0x18] sm:$0xff]
          %v867 = vld [vmem:[#allocation2 + $0x20] sm:$0xff]
          %v868 = vld [vmem:[#allocation2 + $0x28] sm:$0xff]
          %v869 = vld [vmem:[#allocation2 + $0x30] sm:$0xff]
          %v870 = vld [vmem:[#allocation2 + $0x38] sm:$0xff]
          %v871 = vld [vmem:[#allocation2 + $0x40] sm:$0xff]
          %v872 = vld [vmem:[#allocation2 + $0x48] sm:$0xff]
          %v873 = vld [vmem:[#allocation2 + $0x50] sm:$0xff]
          %v874 = vld [vmem:[#allocation2 + $0x58] sm:$0xff]
          %v875 = vld [vmem:[#allocation2 + $0x60] sm:$0xff]
          %v876 = vld [vmem:[#allocation2 + $0x68] sm:$0xff]
          %v877 = vld [vmem:[#allocation2 + $0x70] sm:$0xff]
          %v878 = vld [vmem:[#allocation2 + $0x78] sm:$0xff]
          %v879 = vld [vmem:[#allocation2 + $0x80] sm:$0xff]
          %v880 = vld [vmem:[#allocation2 + $0x88] sm:$0xff]
          %v881 = vld [vmem:[#allocation2 + $0x90] sm:$0xff]
          %v882 = vld [vmem:[#allocation2 + $0x98] sm:$0xff]
          %v883 = vld [vmem:[#allocation2 + $0xa0] sm:$0xff]
          %v884 = vld [vmem:[#allocation2 + $0xa8] sm:$0xff]
          %v885 = vld [vmem:[#allocation2 + $0xb0] sm:$0xff]
          %v886 = vld [vmem:[#allocation2 + $0xb8] sm:$0xff]
          %v887 = vld [vmem:[#allocation2 + $0xc0] sm:$0xff]
          %v888 = vld [vmem:[#allocation2 + $0xc8] sm:$0xff]
          %v889 = vld [vmem:[#allocation2 + $0xd0] sm:$0xff]
          %v890 = vld [vmem:[#allocation2 + $0xd8] sm:$0xff]
          %v891 = vld [vmem:[#allocation2 + $0xe0] sm:$0xff]
          %v892 = vld [vmem:[#allocation2 + $0xe8] sm:$0xff]
          %v893 = vld [vmem:[#allocation2 + $0xf0] sm:$0xff]
          %v894 = vld [vmem:[#allocation2 + $0xf8] sm:$0xff]
          %v895 = vld [vmem:[%s257] sm:$0x1]
          %v897 = vlaneseq
          %v898 = vshrl.u32 %v897, 7
          %v899 = vsub.s32 0, %v898
          %v900 = vrot.slane %v895, %v899
          %v902 = vadd.f32 %v863, %v900
          %v903 = vadd.f32 %v864, %v900
          %v904 = vadd.f32 %v865, %v900
          %v905 = vadd.f32 %v866, %v900
          %v906 = vadd.f32 %v867, %v900
          %v907 = vadd.f32 %v868, %v900
          %v908 = vadd.f32 %v869, %v900
          %v909 = vadd.f32 %v870, %v900
          %v910 = vadd.f32 %v871, %v900
          %v911 = vadd.f32 %v872, %v900
          %v912 = vadd.f32 %v873, %v900
          %v913 = vadd.f32 %v874, %v900
          %v914 = vadd.f32 %v875, %v900
          %v915 = vadd.f32 %v876, %v900
          %v916 = vadd.f32 %v877, %v900
          %v917 = vadd.f32 %v878, %v900
          %v918 = vadd.f32 %v879, %v900
          %v919 = vadd.f32 %v880, %v900
          %v920 = vadd.f32 %v881, %v900
          %v921 = vadd.f32 %v882, %v900
          %v922 = vadd.f32 %v883, %v900
          %v923 = vadd.f32 %v884, %v900
          %v924 = vadd.f32 %v885, %v900
          %v925 = vadd.f32 %v886, %v900
          %v926 = vadd.f32 %v887, %v900
          %v927 = vadd.f32 %v888, %v900
          %v928 = vadd.f32 %v889, %v900
          %v929 = vadd.f32 %v890, %v900
          %v930 = vadd.f32 %v891, %v900
          %v931 = vadd.f32 %v892, %v900
          %v932 = vadd.f32 %v893, %v900
          %v933 = vadd.f32 %v894, %v900
          %v934 = vmax.f32 %v902, 0.0
          %v935 = vmax.f32 %v903, 0.0
          %v936 = vmax.f32 %v904, 0.0
          %v937 = vmax.f32 %v905, 0.0
          %v938 = vmax.f32 %v906, 0.0
          %v939 = vmax.f32 %v907, 0.0
          %v940 = vmax.f32 %v908, 0.0
          %v941 = vmax.f32 %v909, 0.0
          %v942 = vmax.f32 %v910, 0.0
          %v943 = vmax.f32 %v911, 0.0
          %v944 = vmax.f32 %v912, 0.0
          %v945 = vmax.f32 %v913, 0.0
          %v946 = vmax.f32 %v914, 0.0
          %v947 = vmax.f32 %v915, 0.0
          %v948 = vmax.f32 %v916, 0.0
          %v949 = vmax.f32 %v917, 0.0
          %v950 = vmax.f32 %v918, 0.0
          %v951 = vmax.f32 %v919, 0.0
          %v952 = vmax.f32 %v920, 0.0
          %v953 = vmax.f32 %v921, 0.0
          %v954 = vmax.f32 %v922, 0.0
          %v955 = vmax.f32 %v923, 0.0
          %v956 = vmax.f32 %v924, 0.0
          %v957 = vmax.f32 %v925, 0.0
          %v958 = vmax.f32 %v926, 0.0
          %v959 = vmax.f32 %v927, 0.0
          %v960 = vmax.f32 %v928, 0.0
          %v961 = vmax.f32 %v929, 0.0
          %v962 = vmax.f32 %v930, 0.0
          %v963 = vmax.f32 %v931, 0.0
          %v964 = vmax.f32 %v932, 0.0
          %v965 = vmax.f32 %v933, 0.0
          %v966 = vpack.c.bf16 %v935, %v934
          %v967 = vpack.c.bf16 %v937, %v936
          %v968 = vpack.c.bf16 %v939, %v938
          %v969 = vpack.c.bf16 %v941, %v940
          %v970 = vpack.c.bf16 %v943, %v942
          %v971 = vpack.c.bf16 %v945, %v944
          %v972 = vpack.c.bf16 %v947, %v946
          %v973 = vpack.c.bf16 %v949, %v948
          %v974 = vpack.c.bf16 %v951, %v950
          %v975 = vpack.c.bf16 %v953, %v952
          %v976 = vpack.c.bf16 %v955, %v954
          %v977 = vpack.c.bf16 %v957, %v956
          %v978 = vpack.c.bf16 %v959, %v958
          %v979 = vpack.c.bf16 %v961, %v960
          %v980 = vpack.c.bf16 %v963, %v962
          %v981 = vpack.c.bf16 %v965, %v964
          %v998 = vunpack.c.l.b16 %v966
          %v999 = vunpack.c.h.b16 %v966
          %v1000 = vunpack.c.l.b16 %v967
          %v1001 = vunpack.c.h.b16 %v967
          %v1002 = vunpack.c.l.b16 %v968
          %v1003 = vunpack.c.h.b16 %v968
          %v1004 = vunpack.c.l.b16 %v969
          %v1005 = vunpack.c.h.b16 %v969
          %v1006 = vunpack.c.l.b16 %v970
          %v1007 = vunpack.c.h.b16 %v970
          %v1008 = vunpack.c.l.b16 %v971
          %v1009 = vunpack.c.h.b16 %v971
          %v1010 = vunpack.c.l.b16 %v972
          %v1011 = vunpack.c.h.b16 %v972
          %v1012 = vunpack.c.l.b16 %v973
          %v1013 = vunpack.c.h.b16 %v973
          %v1014 = vunpack.c.l.b16 %v974
          %v1015 = vunpack.c.h.b16 %v974
          %v1016 = vunpack.c.l.b16 %v975
          %v1017 = vunpack.c.h.b16 %v975
          %v1018 = vunpack.c.l.b16 %v976
          %v1019 = vunpack.c.h.b16 %v976
          %v1020 = vunpack.c.l.b16 %v977
          %v1021 = vunpack.c.h.b16 %v977
          %v1022 = vunpack.c.l.b16 %v978
          %v1023 = vunpack.c.h.b16 %v978
          %v1024 = vunpack.c.l.b16 %v979
          %v1025 = vunpack.c.h.b16 %v979
          %v1026 = vunpack.c.l.b16 %v980
          %v1027 = vunpack.c.h.b16 %v980
          %v1028 = vunpack.c.l.b16 %v981
          %v1029 = vunpack.c.h.b16 %v981
          %v1030 = vpack.c.b16 %v998, %v998
          %v1031 = vpack.c.b16 %v999, %v999
          %v1032 = vpack.c.b16 %v1000, %v1000
          %v1033 = vpack.c.b16 %v1001, %v1001
          %v1034 = vpack.c.b16 %v1002, %v1002
          %v1035 = vpack.c.b16 %v1003, %v1003
          %v1036 = vpack.c.b16 %v1004, %v1004
          %v1037 = vpack.c.b16 %v1005, %v1005
          %v1038 = vpack.c.b16 %v1006, %v1006
          %v1039 = vpack.c.b16 %v1007, %v1007
          %v1040 = vpack.c.b16 %v1008, %v1008
          %v1041 = vpack.c.b16 %v1009, %v1009
          %v1042 = vpack.c.b16 %v1010, %v1010
          %v1043 = vpack.c.b16 %v1011, %v1011
          %v1044 = vpack.c.b16 %v1012, %v1012
          %v1045 = vpack.c.b16 %v1013, %v1013
          %v1046 = vpack.c.b16 %v1014, %v1014
          %v1047 = vpack.c.b16 %v1015, %v1015
          %v1048 = vpack.c.b16 %v1016, %v1016
          %v1049 = vpack.c.b16 %v1017, %v1017
          %v1050 = vpack.c.b16 %v1018, %v1018
          %v1051 = vpack.c.b16 %v1019, %v1019
          %v1052 = vpack.c.b16 %v1020, %v1020
          %v1053 = vpack.c.b16 %v1021, %v1021
          %v1054 = vpack.c.b16 %v1022, %v1022
          %v1055 = vpack.c.b16 %v1023, %v1023
          %v1056 = vpack.c.b16 %v1024, %v1024
          %v1057 = vpack.c.b16 %v1025, %v1025
          %v1058 = vpack.c.b16 %v1026, %v1026
          %v1059 = vpack.c.b16 %v1027, %v1027
          %v1060 = vpack.c.b16 %v1028, %v1028
          %v1061 = vpack.c.b16 %v1029, %v1029
          %vm1094 = vcmask 519168
          %1095 = vst.msk [vmem:[%s233] sm:$0xf] %vm1094, %v1030
          %1096 = vst.msk [vmem:[%s233 + $0x4] sm:$0xf] %vm1094, %v1031
          %1097 = vst.msk [vmem:[%s233 + $0x8] sm:$0xf] %vm1094, %v1032
          %1098 = vst.msk [vmem:[%s233 + $0xc] sm:$0xf] %vm1094, %v1033
          %1099 = vst.msk [vmem:[%s233 + $0x10] sm:$0xf] %vm1094, %v1034
          %1100 = vst.msk [vmem:[%s233 + $0x14] sm:$0xf] %vm1094, %v1035
          %1101 = vst.msk [vmem:[%s233 + $0x18] sm:$0xf] %vm1094, %v1036
          %1102 = vst.msk [vmem:[%s233 + $0x1c] sm:$0xf] %vm1094, %v1037
          %1103 = vst.msk [vmem:[%s233 + $0x20] sm:$0xf] %vm1094, %v1038
          %1104 = vst.msk [vmem:[%s233 + $0x24] sm:$0xf] %vm1094, %v1039
          %1105 = vst.msk [vmem:[%s233 + $0x28] sm:$0xf] %vm1094, %v1040
          %1106 = vst.msk [vmem:[%s233 + $0x2c] sm:$0xf] %vm1094, %v1041
          %1107 = vst.msk [vmem:[%s233 + $0x30] sm:$0xf] %vm1094, %v1042
          %1108 = vst.msk [vmem:[%s233 + $0x34] sm:$0xf] %vm1094, %v1043
          %1109 = vst.msk [vmem:[%s233 + $0x38] sm:$0xf] %vm1094, %v1044
          %1110 = vst.msk [vmem:[%s233 + $0x3c] sm:$0xf] %vm1094, %v1045
          %1111 = vst.msk [vmem:[%s233 + $0x40] sm:$0xf] %vm1094, %v1046
          %1112 = vst.msk [vmem:[%s233 + $0x44] sm:$0xf] %vm1094, %v1047
          %1113 = vst.msk [vmem:[%s233 + $0x48] sm:$0xf] %vm1094, %v1048
          %1114 = vst.msk [vmem:[%s233 + $0x4c] sm:$0xf] %vm1094, %v1049
          %1115 = vst.msk [vmem:[%s233 + $0x50] sm:$0xf] %vm1094, %v1050
          %1116 = vst.msk [vmem:[%s233 + $0x54] sm:$0xf] %vm1094, %v1051
          %1117 = vst.msk [vmem:[%s233 + $0x58] sm:$0xf] %vm1094, %v1052
          %1118 = vst.msk [vmem:[%s233 + $0x5c] sm:$0xf] %vm1094, %v1053
          %1119 = vst.msk [vmem:[%s233 + $0x60] sm:$0xf] %vm1094, %v1054
          %1120 = vst.msk [vmem:[%s233 + $0x64] sm:$0xf] %vm1094, %v1055
          %1121 = vst.msk [vmem:[%s233 + $0x68] sm:$0xf] %vm1094, %v1056
          %1122 = vst.msk [vmem:[%s233 + $0x6c] sm:$0xf] %vm1094, %v1057
          %1123 = vst.msk [vmem:[%s233 + $0x70] sm:$0xf] %vm1094, %v1058
          %1124 = vst.msk [vmem:[%s233 + $0x74] sm:$0xf] %vm1094, %v1059
          %1125 = vst.msk [vmem:[%s233 + $0x78] sm:$0xf] %vm1094, %v1060
          %1126 = vst.msk [vmem:[%s233 + $0x7c] sm:$0xf] %vm1094, %v1061
        $region40: #{conv_bn.1} parent=31 // pred_fallthru
          _
        %s1127 = sand.u32 %s128, 1
        %s1128 = scalar_lea.sflag [#allocation4], %s1127
        %s1129 = sand.u32 %s128, 1
        %s1130 = smul.addr %s1129, 128
        %s1131 = scalar_lea.vmem [#allocation3], %s1130
        // Predicated region
        $region41: #{conv_bn.1} parent=31 // pred_check
          %p1132 = pneg %p138
        $region42: #{conv_bn.1} parent=31 // pred_check_branch
          %1134 = sbr.rel (%p1132) target = $region44
        $region43: #{conv_bn.1} parent=31 // pred_region
          %s1135 = smul.u32 32, %s22
          %s1137 = ssub.s32 2048, 2048
          %1138 = vsyncadd %s1128, %s1137
          %s1139 = sadd.s32 %s23, %s1135
          %s1140 = smul.addr %s1139, 64
          %s1141 = scalar_lea.hbm %s3, %s1140
          %s1142 = sshll.u32 %s1131, 4
          %s1143 = int_to_ptr.vmem [resolvable:$true] %s1142
          %1148 = dma.vmem_to_hbm [thread:$0]  %s1143, 2048, %s1141, %s1128, 64, 64, 4
        $region44: #{conv_bn.1} parent=31 // pred_fallthru
          _
      $region32: #{conv_bn.1} parent=5 // pred_fallthru
        _
      %p1149 = scmp.le.s32.totalorder 2, %s12
      // Predicated region
      $region45: #{conv_bn.1} parent=5 // pred_check
        %p1150 = pneg %p1149
      $region46: #{conv_bn.1} parent=5 // pred_check_branch
        %1152 = sbr.rel (%p1150) target = $region48
      $region47: #{conv_bn.1} parent=5 // pred_region
        %s1153 = ssub.s32 %s12, 2
        // Predicated region
        $region49: #{conv_bn.1} parent=47 // pred_check
          %p1154 = pneg %p144
        $region50: #{conv_bn.1} parent=47 // pred_check_branch
          %1156 = sbr.rel (%p1154) target = $region52
        $region51: #{conv_bn.1} parent=47 // pred_region
          %s1157 = sand.u32 %s129, 1
          %s1158 = scalar_lea.sflag [#allocation4], %s1157
          %s1159 = sand.u32 %s129, 1
          %s1160 = smul.addr %s1159, 128
          %s1161 = scalar_lea.vmem [#allocation3], %s1160
          %1162 = dma.done %s1158, 2048
        $region52: #{conv_bn.1} parent=47 // pred_fallthru
          _
      $region48: #{conv_bn.1} parent=5 // pred_fallthru
        _
    $region6: #{conv_bn.1} parent=1 // loop_footer
      %s16 = sadd.s32 1, %s12
    $region7: #{conv_bn.1} parent=1 // loop_footer_branch
      %11 = sbr.rel target = $region3
    $region8: #{conv_bn.1} parent=1 // loop_exit
      _
    %1163 = vsyncpa [#allocation4], 1
    %s1164 = scalar_lea.sflag [#allocation4], 1
    %1165 = vsyncpa %s1164, 1

</llo_original>
